<compile_context>
chip_gen: v6e
topology: v6e:2x2x1
jax: 0.10.0
libtpu: 0.0.40
codegen_flags: <defaults>
</compile_context>

<pallas_src>
import functools

import jax
import jax.numpy as jnp
from jax import lax
from jax.experimental import pallas as pl
from jax.experimental.pallas import tpu as pltpu


def _hybrid_euler_kernel(x0_ref, w1_ref, b1_ref, w2_ref, b2_ref,
                         X_ref, x_sc, u_sc, *, dt, n_groups):
    """Integrates one (batch-block, time-chunk) tile of the trajectory.

    Layouts (batch in lanes):
      x0_ref : (D, Bb)             initial state (FMU initialize stand-in)
      w1_ref : (H, 1)              augment layer-1 weight column
      b1_ref : (H, 1)              layer-1 bias column
      w2_ref : (H, 1)              layer-2 weight column
      b2_ref : (1, 1)              layer-2 bias
      X_ref  : (D, t_chunk, Bb)    state trajectory chunk (component-major)
      x_sc   : (D, Bb)             carried state across time chunks
      u_sc   : (1, Bb)             carried pre-computed control u across chunks
    """
    H = w1_ref.shape[0]
    Bb = x0_ref.shape[1]

    # Hoist loop-invariant lane broadcasts of the weights out of the hot loop.
    w1b = jnp.broadcast_to(w1_ref[...], (H, Bb))          # (H, Bb)
    b1b = jnp.broadcast_to(b1_ref[...], (H, Bb))          # (H, Bb)
    w2b = jnp.broadcast_to(w2_ref[...], (H, Bb))          # (H, Bb)
    b2b = jnp.broadcast_to(b2_ref[...], (1, Bb))          # (1, Bb)

    def mlp(y0):
        # augment_model(y[[0]]): Linear(1,H) -> tanh -> Linear(H,1)
        # VPU mul/add, EUP tanh, XLU sublane reduce; kept off the MXU.
        h = jnp.tanh(w1b * y0 + b1b)                              # (H, Bb)
        return jnp.sum(h * w2b, axis=0, keepdims=True) + b2b      # (1, Bb)

    # (Re)initialize the carried state at the start of each batch block's sweep.
    @pl.when(pl.program_id(1) == 0)
    def _():
        x_sc[...] = x0_ref[...]
        # Initial FMU output == initial state, so u for step 0 is MLP(x0[0]).
        u_sc[...] = mlp(x0_ref[0:1, :])

    # Register carries for the whole chunk: one scratch read here, one write at
    # the end — the serial recurrence never round-trips through VMEM.
    x0 = x_sc[0:1, :]
    x1 = x_sc[1:2, :]
    u = u_sc[...]

    def group(g, carry):
        x0, x1, u = carry
        x0_rows = []
        x1_rows = []
        for _ in range(8):                 # 8-step unrolled scheduling window
            x0_rows.append(x0)
            x1_rows.append(x1)
            # Software-pipelined MLP: u for step t+1 needs only the pre-update
            # x0 of step t, so the tanh/reduce chain gets a full step of slack.
            u_next = mlp(x0)
            # Synthetic FMU (Van der Pol, mu == u); explicit euler step with
            # the u that was pre-computed one step earlier:
            #   dx0 = x1 ;  dx1 = u * (1 - x0^2) * x1 - x0
            x0n = x0 + dt * x1
            x1n = x1 + dt * (u * (1.0 - x0 * x0) * x1 - x0)
            x0, x1, u = x0n, x1n, u_next
        # Coalesced trajectory store: one dense unmasked (8, Bb) store per
        # state component instead of eight masked per-step stores.
        base = pl.multiple_of(g * 8, 8)
        X_ref[0, pl.ds(base, 8), :] = jnp.concatenate(x0_rows, axis=0)
        X_ref[1, pl.ds(base, 8), :] = jnp.concatenate(x1_rows, axis=0)
        return (x0, x1, u)

    x0, x1, u = lax.fori_loop(0, n_groups, group, (x0, x1, u))

    # Persist the carries across time chunks.
    x_sc[0:1, :] = x0
    x_sc[1:2, :] = x1
    u_sc[...] = u


def init_augment_params(key, hidden=32):
    """Torch-shaped params for Sequential(Linear(1,H), Tanh, Linear(H,1))."""
    k1, k2, k3, k4 = jax.random.split(key, 4)
    return dict(
        w1=0.5 * jax.random.normal(k1, (hidden, 1), jnp.float32),   # Linear(1,H).weight
        b1=0.1 * jax.random.normal(k2, (hidden,), jnp.float32),     # Linear(1,H).bias
        w2=0.5 * jax.random.normal(k3, (1, hidden), jnp.float32),   # Linear(H,1).weight
        b2=0.1 * jax.random.normal(k4, (1,), jnp.float32),          # Linear(H,1).bias
    )


def _pick_t_chunk(T, requested):
    """Chunk length: multiple of 8; prefer one dividing the padded horizon."""
    T8 = ((T + 7) // 8) * 8
    req = max(8, min(int(requested), T8))
    req = ((req + 7) // 8) * 8
    c = req
    while c >= max(8, req // 2):
        if T8 % c == 0:           # no wasted (padded) serial steps
            return c, T8
        c -= 8
    return req, T8                # fall back: at most t_chunk-1 padded steps


def hybrid_forward(U, params, dt=0.1, x_init=(1.0, 0.0), t_chunk=1024):
    """Pallas version of HybridModel.forward (euler solver).

    Returns (Y, X) like the torch code, each of shape (nr_batches, nr_steps, D).
    Only U's shape is used, exactly as in the original module.
    """
    B, T = int(U.shape[0]), int(U.shape[1])
    D = 2                                 # len(ode_model._rx) == len(_ry) == 2 (VdP)
    H = int(params["w1"].shape[0])

    # Lane-dense batch: pad to a multiple of 128 so every vector op / store uses
    # full lanes and the "parallel" axis can shard across TensorCores (B>=256).
    b_block = 128
    B_pad = ((B + b_block - 1) // b_block) * b_block
    n_b = B_pad // b_block

    t_chunk, T8 = _pick_t_chunk(T, t_chunk)
    n_t = pl.cdiv(T8, t_chunk)
    T_pad = n_t * t_chunk

    # Kernel-side layouts: batch in lanes, weights as (H, 1) columns.
    x0 = jnp.broadcast_to(jnp.asarray(x_init, jnp.float32).reshape(D, 1), (D, B_pad))
    w1 = params["w1"].reshape(H, 1).astype(jnp.float32)
    b1 = params["b1"].reshape(H, 1).astype(jnp.float32)
    w2 = params["w2"].reshape(H, 1).astype(jnp.float32)
    b2 = params["b2"].reshape(1, 1).astype(jnp.float32)

    kernel = functools.partial(_hybrid_euler_kernel, dt=float(dt),
                               n_groups=t_chunk // 8)

    X_dm = pl.pallas_call(
        kernel,
        out_shape=jax.ShapeDtypeStruct((D, T_pad, B_pad), jnp.float32),
        grid_spec=pltpu.PrefetchScalarGridSpec(
            num_scalar_prefetch=0,
            grid=(n_b, n_t),
            in_specs=[
                pl.BlockSpec((D, b_block), lambda b, t: (0, b)),
                pl.BlockSpec((H, 1), lambda b, t: (0, 0)),
                pl.BlockSpec((H, 1), lambda b, t: (0, 0)),
                pl.BlockSpec((H, 1), lambda b, t: (0, 0)),
                pl.BlockSpec((1, 1), lambda b, t: (0, 0)),
            ],
            out_specs=pl.BlockSpec((D, t_chunk, b_block), lambda b, t: (0, t, b)),
            scratch_shapes=[pltpu.VMEM((D, b_block), jnp.float32),
                            pltpu.VMEM((1, b_block), jnp.float32)],
        ),
        compiler_params=pltpu.CompilerParams(
            dimension_semantics=("parallel", "arbitrary")),
    )(x0, w1, b1, w2, b2)

    # (D, T_pad, B_pad) -> (B, T, D): single layout pass to the torch convention.
    X = jnp.transpose(X_dm[:, :T, :B], (2, 1, 0))
    # Y is fully redundant (Y[0] == X[0], Y[t] == X[t-1]); materialized only to
    # match the torch return signature — consumers needing just X can skip it.
    Y = jnp.concatenate([X[:, :1], X[:, :-1]], axis=1)
    return Y, X


def hybrid_forward_ref(U, params, dt=0.1, x_init=(1.0, 0.0)):
    """Pure-JAX reference mirroring the PyTorch loop semantics exactly."""
    B, T = int(U.shape[0]), int(U.shape[1])
    H = int(params["w1"].shape[0])
    w1 = params["w1"].reshape(1, H)
    b1 = params["b1"].reshape(1, H)
    w2 = params["w2"].reshape(1, H)
    b2 = params["b2"].reshape(1, 1)
    x = jnp.broadcast_to(jnp.asarray(x_init, jnp.float32), (B, 2))
    y = x
    Xs, Ys = [], []
    for _ in range(T):
        h = jnp.tanh(y[:, 0:1] * w1 + b1)                      # (B, H)
        u = jnp.sum(h * w2, axis=1, keepdims=True) + b2        # (B, 1)
        Xs.append(x)
        Ys.append(y)
        x0c, x1c = x[:, 0:1], x[:, 1:2]
        dx = jnp.concatenate([x1c, u * (1.0 - x0c * x0c) * x1c - x0c], axis=1)
        y = x                                                  # output at current x
        x = x + dt * dx                                        # euler step
    return jnp.stack(Ys, axis=1), jnp.stack(Xs, axis=1)


if __name__ == "__main__":
    key = jax.random.PRNGKey(0)
    k_params, k_u = jax.random.split(key)

    # U: (nr_batches, nr_steps, 1) — only its shape is used, like the torch code.
    U = jax.random.normal(k_u, (2, 8, 1), jnp.float32)
    params = init_augment_params(k_params, hidden=32)

    Y, X = hybrid_forward(U, params, dt=0.1)
    Y = jax.block_until_ready(Y)
    X = jax.block_until_ready(X)

    Y_ref, X_ref = hybrid_forward_ref(U, params, dt=0.1)
    assert Y.shape == (2, 8, 2) and X.shape == (2, 8, 2)
    assert jnp.allclose(Y, Y_ref, rtol=1e-5, atol=1e-5)
    assert jnp.allclose(X, X_ref, rtol=1e-5, atol=1e-5)

    print("KERNEL_OK")
</pallas_src>

<mosaic_0001>
module attributes {stable_mosaic.version = 11 : i64} {
  func.func @_hybrid_euler_kernel(%arg0: i32, %arg1: i32, %arg2: memref<2x128xf32, #tpu.memory_space<vmem>>, %arg3: memref<32x1xf32, #tpu.memory_space<vmem>>, %arg4: memref<32x1xf32, #tpu.memory_space<vmem>>, %arg5: memref<32x1xf32, #tpu.memory_space<vmem>>, %arg6: memref<1x1xf32, #tpu.memory_space<vmem>>, %arg7: memref<2x8x128xf32, #tpu.memory_space<vmem>>, %arg8: memref<2x128xf32, #tpu.memory_space<vmem>>, %arg9: memref<1x128xf32, #tpu.memory_space<vmem>>) attributes {dimension_semantics = [#tpu.dimension_semantics<parallel>, #tpu.dimension_semantics<arbitrary>], iteration_bounds = array<i64: 1, 1>, scalar_prefetch = 0 : i64, scratch_operands = 2 : i64, tpu.core_type = #tpu.core_type<tc>, window_params = [{transform_indices = @transform_0, window_bounds = array<i64: 2, 128>}, {pipeline_mode = #tpu.pipeline_mode<synchronous>, transform_indices = @transform_1, window_bounds = array<i64: 32, 1>}, {pipeline_mode = #tpu.pipeline_mode<synchronous>, transform_indices = @transform_2, window_bounds = array<i64: 32, 1>}, {pipeline_mode = #tpu.pipeline_mode<synchronous>, transform_indices = @transform_3, window_bounds = array<i64: 32, 1>}, {pipeline_mode = #tpu.pipeline_mode<synchronous>, transform_indices = @transform_4, window_bounds = array<i64: 1, 1>}, {transform_indices = @transform_5, window_bounds = array<i64: 2, 8, 128>}]} {
    %c0 = arith.constant 0 : index
    %c0_0 = arith.constant 0 : index
    %0 = vector.load %arg3[%c0, %c0_0] : memref<32x1xf32, #tpu.memory_space<vmem>>, vector<32x1xf32>
    %1 = vector.shape_cast %0 : vector<32x1xf32> to vector<32x1xf32>
    %2 = vector.broadcast %1 : vector<32x1xf32> to vector<32x128xf32>
    %c0_1 = arith.constant 0 : index
    %c0_2 = arith.constant 0 : index
    %3 = vector.load %arg4[%c0_1, %c0_2] : memref<32x1xf32, #tpu.memory_space<vmem>>, vector<32x1xf32>
    %4 = vector.shape_cast %3 : vector<32x1xf32> to vector<32x1xf32>
    %5 = vector.broadcast %4 : vector<32x1xf32> to vector<32x128xf32>
    %c0_3 = arith.constant 0 : index
    %c0_4 = arith.constant 0 : index
    %6 = vector.load %arg5[%c0_3, %c0_4] : memref<32x1xf32, #tpu.memory_space<vmem>>, vector<32x1xf32>
    %7 = vector.shape_cast %6 : vector<32x1xf32> to vector<32x1xf32>
    %8 = vector.broadcast %7 : vector<32x1xf32> to vector<32x128xf32>
    %c0_5 = arith.constant 0 : index
    %c0_6 = arith.constant 0 : index
    %9 = vector.load %arg6[%c0_5, %c0_6] : memref<1x1xf32, #tpu.memory_space<vmem>>, vector<1x1xf32>
    %10 = vector.shape_cast %9 : vector<1x1xf32> to vector<1x1xf32>
    %11 = vector.broadcast %10 : vector<1x1xf32> to vector<1x128xf32>
    %c0_i32 = arith.constant 0 : i32
    %12 = arith.cmpi eq, %arg1, %c0_i32 : i32
    %13 = arith.extui %12 : i1 to i32
    %c0_i32_7 = arith.constant 0 : i32
    %14 = arith.cmpi ne, %13, %c0_i32_7 : i32
    scf.if %14 {
      %c0_55 = arith.constant 0 : index
      %c0_56 = arith.constant 0 : index
      %193 = vector.load %arg2[%c0_55, %c0_56] : memref<2x128xf32, #tpu.memory_space<vmem>>, vector<2x128xf32>
      %c0_57 = arith.constant 0 : index
      %c0_58 = arith.constant 0 : index
      %194 = vector.load %arg8[%c0_57, %c0_58] : memref<2x128xf32, #tpu.memory_space<vmem>>, vector<2x128xf32>
      tpu.vector_store %arg8[%c0_57, %c0_58], %193 {strides = array<i32>} : memref<2x128xf32, #tpu.memory_space<vmem>>, vector<2x128xf32>,
      %c0_59 = arith.constant 0 : index
      %c0_60 = arith.constant 0 : index
      %195 = vector.load %arg2[%c0_59, %c0_60] : memref<2x128xf32, #tpu.memory_space<vmem>>, vector<1x128xf32>
      %196 = vector.broadcast %195 : vector<1x128xf32> to vector<32x128xf32>
      %197 = arith.mulf %2, %196 : vector<32x128xf32>
      %198 = arith.addf %197, %5 : vector<32x128xf32>
      %199 = math.tanh %198 : vector<32x128xf32>
      %200 = arith.mulf %199, %8 : vector<32x128xf32>
      %cst_61 = arith.constant dense<0.000000e+00> : vector<128xf32>
      %201 = vector.multi_reduction <add>, %200, %cst_61 [0] : vector<32x128xf32> to vector<128xf32>
      %202 = vector.shape_cast %201 : vector<128xf32> to vector<1x128xf32>
      %203 = arith.addf %202, %11 : vector<1x128xf32>
      %c0_62 = arith.constant 0 : index
      %c0_63 = arith.constant 0 : index
      %204 = vector.load %arg9[%c0_62, %c0_63] : memref<1x128xf32, #tpu.memory_space<vmem>>, vector<1x128xf32>
      tpu.vector_store %arg9[%c0_62, %c0_63], %203 {strides = array<i32>} : memref<1x128xf32, #tpu.memory_space<vmem>>, vector<1x128xf32>,
    } else {
    }
    %c0_8 = arith.constant 0 : index
    %c0_9 = arith.constant 0 : index
    %15 = vector.load %arg8[%c0_8, %c0_9] : memref<2x128xf32, #tpu.memory_space<vmem>>, vector<1x128xf32>
    %c1 = arith.constant 1 : index
    %c0_10 = arith.constant 0 : index
    %16 = vector.load %arg8[%c1, %c0_10] : memref<2x128xf32, #tpu.memory_space<vmem>>, vector<1x128xf32>
    %c0_11 = arith.constant 0 : index
    %c0_12 = arith.constant 0 : index
    %17 = vector.load %arg9[%c0_11, %c0_12] : memref<1x128xf32, #tpu.memory_space<vmem>>, vector<1x128xf32>
    %c0_i32_13 = arith.constant 0 : i32
    %18 = vector.broadcast %15 : vector<1x128xf32> to vector<32x128xf32>
    %19 = arith.mulf %2, %18 : vector<32x128xf32>
    %20 = arith.addf %19, %5 : vector<32x128xf32>
    %21 = math.tanh %20 : vector<32x128xf32>
    %22 = arith.mulf %21, %8 : vector<32x128xf32>
    %cst = arith.constant dense<0.000000e+00> : vector<128xf32>
    %23 = vector.multi_reduction <add>, %22, %cst [0] : vector<32x128xf32> to vector<128xf32>
    %24 = vector.shape_cast %23 : vector<128xf32> to vector<1x128xf32>
    %25 = arith.addf %24, %11 : vector<1x128xf32>
    %cst_14 = arith.constant 1.000000e-01 : f32
    %26 = vector.broadcast %cst_14 : f32 to vector<1x128xf32>
    %27 = arith.mulf %26, %16 : vector<1x128xf32>
    %28 = arith.addf %15, %27 : vector<1x128xf32>
    %29 = arith.mulf %15, %15 : vector<1x128xf32>
    %cst_15 = arith.constant 1.000000e+00 : f32
    %30 = vector.broadcast %cst_15 : f32 to vector<1x128xf32>
    %31 = arith.subf %30, %29 : vector<1x128xf32>
    %32 = arith.mulf %17, %31 : vector<1x128xf32>
    %33 = arith.mulf %32, %16 : vector<1x128xf32>
    %34 = arith.subf %33, %15 : vector<1x128xf32>
    %cst_16 = arith.constant 1.000000e-01 : f32
    %35 = vector.broadcast %cst_16 : f32 to vector<1x128xf32>
    %36 = arith.mulf %35, %34 : vector<1x128xf32>
    %37 = arith.addf %16, %36 : vector<1x128xf32>
    %38 = vector.broadcast %28 : vector<1x128xf32> to vector<32x128xf32>
    %39 = arith.mulf %2, %38 : vector<32x128xf32>
    %40 = arith.addf %39, %5 : vector<32x128xf32>
    %41 = math.tanh %40 : vector<32x128xf32>
    %42 = arith.mulf %41, %8 : vector<32x128xf32>
    %cst_17 = arith.constant dense<0.000000e+00> : vector<128xf32>
    %43 = vector.multi_reduction <add>, %42, %cst_17 [0] : vector<32x128xf32> to vector<128xf32>
    %44 = vector.shape_cast %43 : vector<128xf32> to vector<1x128xf32>
    %45 = arith.addf %44, %11 : vector<1x128xf32>
    %cst_18 = arith.constant 1.000000e-01 : f32
    %46 = vector.broadcast %cst_18 : f32 to vector<1x128xf32>
    %47 = arith.mulf %46, %37 : vector<1x128xf32>
    %48 = arith.addf %28, %47 : vector<1x128xf32>
    %49 = arith.mulf %28, %28 : vector<1x128xf32>
    %cst_19 = arith.constant 1.000000e+00 : f32
    %50 = vector.broadcast %cst_19 : f32 to vector<1x128xf32>
    %51 = arith.subf %50, %49 : vector<1x128xf32>
    %52 = arith.mulf %25, %51 : vector<1x128xf32>
    %53 = arith.mulf %52, %37 : vector<1x128xf32>
    %54 = arith.subf %53, %28 : vector<1x128xf32>
    %cst_20 = arith.constant 1.000000e-01 : f32
    %55 = vector.broadcast %cst_20 : f32 to vector<1x128xf32>
    %56 = arith.mulf %55, %54 : vector<1x128xf32>
    %57 = arith.addf %37, %56 : vector<1x128xf32>
    %58 = vector.broadcast %48 : vector<1x128xf32> to vector<32x128xf32>
    %59 = arith.mulf %2, %58 : vector<32x128xf32>
    %60 = arith.addf %59, %5 : vector<32x128xf32>
    %61 = math.tanh %60 : vector<32x128xf32>
    %62 = arith.mulf %61, %8 : vector<32x128xf32>
    %cst_21 = arith.constant dense<0.000000e+00> : vector<128xf32>
    %63 = vector.multi_reduction <add>, %62, %cst_21 [0] : vector<32x128xf32> to vector<128xf32>
    %64 = vector.shape_cast %63 : vector<128xf32> to vector<1x128xf32>
    %65 = arith.addf %64, %11 : vector<1x128xf32>
    %cst_22 = arith.constant 1.000000e-01 : f32
    %66 = vector.broadcast %cst_22 : f32 to vector<1x128xf32>
    %67 = arith.mulf %66, %57 : vector<1x128xf32>
    %68 = arith.addf %48, %67 : vector<1x128xf32>
    %69 = arith.mulf %48, %48 : vector<1x128xf32>
    %cst_23 = arith.constant 1.000000e+00 : f32
    %70 = vector.broadcast %cst_23 : f32 to vector<1x128xf32>
    %71 = arith.subf %70, %69 : vector<1x128xf32>
    %72 = arith.mulf %45, %71 : vector<1x128xf32>
    %73 = arith.mulf %72, %57 : vector<1x128xf32>
    %74 = arith.subf %73, %48 : vector<1x128xf32>
    %cst_24 = arith.constant 1.000000e-01 : f32
    %75 = vector.broadcast %cst_24 : f32 to vector<1x128xf32>
    %76 = arith.mulf %75, %74 : vector<1x128xf32>
    %77 = arith.addf %57, %76 : vector<1x128xf32>
    %78 = vector.broadcast %68 : vector<1x128xf32> to vector<32x128xf32>
    %79 = arith.mulf %2, %78 : vector<32x128xf32>
    %80 = arith.addf %79, %5 : vector<32x128xf32>
    %81 = math.tanh %80 : vector<32x128xf32>
    %82 = arith.mulf %81, %8 : vector<32x128xf32>
    %cst_25 = arith.constant dense<0.000000e+00> : vector<128xf32>
    %83 = vector.multi_reduction <add>, %82, %cst_25 [0] : vector<32x128xf32> to vector<128xf32>
    %84 = vector.shape_cast %83 : vector<128xf32> to vector<1x128xf32>
    %85 = arith.addf %84, %11 : vector<1x128xf32>
    %cst_26 = arith.constant 1.000000e-01 : f32
    %86 = vector.broadcast %cst_26 : f32 to vector<1x128xf32>
    %87 = arith.mulf %86, %77 : vector<1x128xf32>
    %88 = arith.addf %68, %87 : vector<1x128xf32>
    %89 = arith.mulf %68, %68 : vector<1x128xf32>
    %cst_27 = arith.constant 1.000000e+00 : f32
    %90 = vector.broadcast %cst_27 : f32 to vector<1x128xf32>
    %91 = arith.subf %90, %89 : vector<1x128xf32>
    %92 = arith.mulf %65, %91 : vector<1x128xf32>
    %93 = arith.mulf %92, %77 : vector<1x128xf32>
    %94 = arith.subf %93, %68 : vector<1x128xf32>
    %cst_28 = arith.constant 1.000000e-01 : f32
    %95 = vector.broadcast %cst_28 : f32 to vector<1x128xf32>
    %96 = arith.mulf %95, %94 : vector<1x128xf32>
    %97 = arith.addf %77, %96 : vector<1x128xf32>
    %98 = vector.broadcast %88 : vector<1x128xf32> to vector<32x128xf32>
    %99 = arith.mulf %2, %98 : vector<32x128xf32>
    %100 = arith.addf %99, %5 : vector<32x128xf32>
    %101 = math.tanh %100 : vector<32x128xf32>
    %102 = arith.mulf %101, %8 : vector<32x128xf32>
    %cst_29 = arith.constant dense<0.000000e+00> : vector<128xf32>
    %103 = vector.multi_reduction <add>, %102, %cst_29 [0] : vector<32x128xf32> to vector<128xf32>
    %104 = vector.shape_cast %103 : vector<128xf32> to vector<1x128xf32>
    %105 = arith.addf %104, %11 : vector<1x128xf32>
    %cst_30 = arith.constant 1.000000e-01 : f32
    %106 = vector.broadcast %cst_30 : f32 to vector<1x128xf32>
    %107 = arith.mulf %106, %97 : vector<1x128xf32>
    %108 = arith.addf %88, %107 : vector<1x128xf32>
    %109 = arith.mulf %88, %88 : vector<1x128xf32>
    %cst_31 = arith.constant 1.000000e+00 : f32
    %110 = vector.broadcast %cst_31 : f32 to vector<1x128xf32>
    %111 = arith.subf %110, %109 : vector<1x128xf32>
    %112 = arith.mulf %85, %111 : vector<1x128xf32>
    %113 = arith.mulf %112, %97 : vector<1x128xf32>
    %114 = arith.subf %113, %88 : vector<1x128xf32>
    %cst_32 = arith.constant 1.000000e-01 : f32
    %115 = vector.broadcast %cst_32 : f32 to vector<1x128xf32>
    %116 = arith.mulf %115, %114 : vector<1x128xf32>
    %117 = arith.addf %97, %116 : vector<1x128xf32>
    %118 = vector.broadcast %108 : vector<1x128xf32> to vector<32x128xf32>
    %119 = arith.mulf %2, %118 : vector<32x128xf32>
    %120 = arith.addf %119, %5 : vector<32x128xf32>
    %121 = math.tanh %120 : vector<32x128xf32>
    %122 = arith.mulf %121, %8 : vector<32x128xf32>
    %cst_33 = arith.constant dense<0.000000e+00> : vector<128xf32>
    %123 = vector.multi_reduction <add>, %122, %cst_33 [0] : vector<32x128xf32> to vector<128xf32>
    %124 = vector.shape_cast %123 : vector<128xf32> to vector<1x128xf32>
    %125 = arith.addf %124, %11 : vector<1x128xf32>
    %cst_34 = arith.constant 1.000000e-01 : f32
    %126 = vector.broadcast %cst_34 : f32 to vector<1x128xf32>
    %127 = arith.mulf %126, %117 : vector<1x128xf32>
    %128 = arith.addf %108, %127 : vector<1x128xf32>
    %129 = arith.mulf %108, %108 : vector<1x128xf32>
    %cst_35 = arith.constant 1.000000e+00 : f32
    %130 = vector.broadcast %cst_35 : f32 to vector<1x128xf32>
    %131 = arith.subf %130, %129 : vector<1x128xf32>
    %132 = arith.mulf %105, %131 : vector<1x128xf32>
    %133 = arith.mulf %132, %117 : vector<1x128xf32>
    %134 = arith.subf %133, %108 : vector<1x128xf32>
    %cst_36 = arith.constant 1.000000e-01 : f32
    %135 = vector.broadcast %cst_36 : f32 to vector<1x128xf32>
    %136 = arith.mulf %135, %134 : vector<1x128xf32>
    %137 = arith.addf %117, %136 : vector<1x128xf32>
    %138 = vector.broadcast %128 : vector<1x128xf32> to vector<32x128xf32>
    %139 = arith.mulf %2, %138 : vector<32x128xf32>
    %140 = arith.addf %139, %5 : vector<32x128xf32>
    %141 = math.tanh %140 : vector<32x128xf32>
    %142 = arith.mulf %141, %8 : vector<32x128xf32>
    %cst_37 = arith.constant dense<0.000000e+00> : vector<128xf32>
    %143 = vector.multi_reduction <add>, %142, %cst_37 [0] : vector<32x128xf32> to vector<128xf32>
    %144 = vector.shape_cast %143 : vector<128xf32> to vector<1x128xf32>
    %145 = arith.addf %144, %11 : vector<1x128xf32>
    %cst_38 = arith.constant 1.000000e-01 : f32
    %146 = vector.broadcast %cst_38 : f32 to vector<1x128xf32>
    %147 = arith.mulf %146, %137 : vector<1x128xf32>
    %148 = arith.addf %128, %147 : vector<1x128xf32>
    %149 = arith.mulf %128, %128 : vector<1x128xf32>
    %cst_39 = arith.constant 1.000000e+00 : f32
    %150 = vector.broadcast %cst_39 : f32 to vector<1x128xf32>
    %151 = arith.subf %150, %149 : vector<1x128xf32>
    %152 = arith.mulf %125, %151 : vector<1x128xf32>
    %153 = arith.mulf %152, %137 : vector<1x128xf32>
    %154 = arith.subf %153, %128 : vector<1x128xf32>
    %cst_40 = arith.constant 1.000000e-01 : f32
    %155 = vector.broadcast %cst_40 : f32 to vector<1x128xf32>
    %156 = arith.mulf %155, %154 : vector<1x128xf32>
    %157 = arith.addf %137, %156 : vector<1x128xf32>
    %158 = vector.broadcast %148 : vector<1x128xf32> to vector<32x128xf32>
    %159 = arith.mulf %2, %158 : vector<32x128xf32>
    %160 = arith.addf %159, %5 : vector<32x128xf32>
    %161 = math.tanh %160 : vector<32x128xf32>
    %162 = arith.mulf %161, %8 : vector<32x128xf32>
    %cst_41 = arith.constant dense<0.000000e+00> : vector<128xf32>
    %163 = vector.multi_reduction <add>, %162, %cst_41 [0] : vector<32x128xf32> to vector<128xf32>
    %164 = vector.shape_cast %163 : vector<128xf32> to vector<1x128xf32>
    %165 = arith.addf %164, %11 : vector<1x128xf32>
    %cst_42 = arith.constant 1.000000e-01 : f32
    %166 = vector.broadcast %cst_42 : f32 to vector<1x128xf32>
    %167 = arith.mulf %166, %157 : vector<1x128xf32>
    %168 = arith.addf %148, %167 : vector<1x128xf32>
    %169 = arith.mulf %148, %148 : vector<1x128xf32>
    %cst_43 = arith.constant 1.000000e+00 : f32
    %170 = vector.broadcast %cst_43 : f32 to vector<1x128xf32>
    %171 = arith.subf %170, %169 : vector<1x128xf32>
    %172 = arith.mulf %145, %171 : vector<1x128xf32>
    %173 = arith.mulf %172, %157 : vector<1x128xf32>
    %174 = arith.subf %173, %148 : vector<1x128xf32>
    %cst_44 = arith.constant 1.000000e-01 : f32
    %175 = vector.broadcast %cst_44 : f32 to vector<1x128xf32>
    %176 = arith.mulf %175, %174 : vector<1x128xf32>
    %177 = arith.addf %157, %176 : vector<1x128xf32>
    %c8_i32 = arith.constant 8 : i32
    %178 = arith.muli %c0_i32_13, %c8_i32 : i32
    %179 = tpu.assume_multiple %178, 8 : i32
    %180 = tpu.concatenate %15, %28, %48, %68, %88, %108, %128, %148 in 0 : vector<1x128xf32>, vector<1x128xf32>, vector<1x128xf32>, vector<1x128xf32>, vector<1x128xf32>, vector<1x128xf32>, vector<1x128xf32>, vector<1x128xf32> -> vector<8x128xf32>
    %c0_45 = arith.constant 0 : index
    %181 = arith.index_cast %179 : i32 to index
    %c0_46 = arith.constant 0 : index
    %182 = vector.load %arg7[%c0_45, %181, %c0_46] : memref<2x8x128xf32, #tpu.memory_space<vmem>>, vector<1x8x128xf32>
    %183 = vector.shape_cast %182 : vector<1x8x128xf32> to vector<8x128xf32>
    %184 = vector.shape_cast %180 : vector<8x128xf32> to vector<1x8x128xf32>
    tpu.vector_store %arg7[%c0_45, %181, %c0_46], %184 {strides = array<i32>} : memref<2x8x128xf32, #tpu.memory_space<vmem>>, vector<1x8x128xf32>,
    %185 = tpu.concatenate %16, %37, %57, %77, %97, %117, %137, %157 in 0 : vector<1x128xf32>, vector<1x128xf32>, vector<1x128xf32>, vector<1x128xf32>, vector<1x128xf32>, vector<1x128xf32>, vector<1x128xf32>, vector<1x128xf32> -> vector<8x128xf32>
    %c1_47 = arith.constant 1 : index
    %186 = arith.index_cast %179 : i32 to index
    %c0_48 = arith.constant 0 : index
    %187 = vector.load %arg7[%c1_47, %186, %c0_48] : memref<2x8x128xf32, #tpu.memory_space<vmem>>, vector<1x8x128xf32>
    %188 = vector.shape_cast %187 : vector<1x8x128xf32> to vector<8x128xf32>
    %189 = vector.shape_cast %185 : vector<8x128xf32> to vector<1x8x128xf32>
    tpu.vector_store %arg7[%c1_47, %186, %c0_48], %189 {strides = array<i32>} : memref<2x8x128xf32, #tpu.memory_space<vmem>>, vector<1x8x128xf32>,
    %c1_i32 = arith.constant 1 : i32
    %c0_49 = arith.constant 0 : index
    %c0_50 = arith.constant 0 : index
    %190 = vector.load %arg8[%c0_49, %c0_50] : memref<2x128xf32, #tpu.memory_space<vmem>>, vector<1x128xf32>
    tpu.vector_store %arg8[%c0_49, %c0_50], %168 {strides = array<i32>} : memref<2x128xf32, #tpu.memory_space<vmem>>, vector<1x128xf32>,
    %c1_51 = arith.constant 1 : index
    %c0_52 = arith.constant 0 : index
    %191 = vector.load %arg8[%c1_51, %c0_52] : memref<2x128xf32, #tpu.memory_space<vmem>>, vector<1x128xf32>
    tpu.vector_store %arg8[%c1_51, %c0_52], %177 {strides = array<i32>} : memref<2x128xf32, #tpu.memory_space<vmem>>, vector<1x128xf32>,
    %c0_53 = arith.constant 0 : index
    %c0_54 = arith.constant 0 : index
    %192 = vector.load %arg9[%c0_53, %c0_54] : memref<1x128xf32, #tpu.memory_space<vmem>>, vector<1x128xf32>
    tpu.vector_store %arg9[%c0_53, %c0_54], %165 {strides = array<i32>} : memref<1x128xf32, #tpu.memory_space<vmem>>, vector<1x128xf32>,
    return
  }
  func.func @transform_0(%arg0: i32, %arg1: i32) -> (i32, i32) {
    %c0_i32 = arith.constant 0 : i32
    %c0_i32_0 = arith.constant 0 : i32
    return %c0_i32, %arg0 : i32, i32
  }
  func.func @transform_1(%arg0: i32, %arg1: i32) -> (i32, i32) {
    %c0_i32 = arith.constant 0 : i32
    %c0_i32_0 = arith.constant 0 : i32
    %c0_i32_1 = arith.constant 0 : i32
    return %c0_i32, %c0_i32_0 : i32, i32
  }
  func.func @transform_2(%arg0: i32, %arg1: i32) -> (i32, i32) {
    %c0_i32 = arith.constant 0 : i32
    %c0_i32_0 = arith.constant 0 : i32
    %c0_i32_1 = arith.constant 0 : i32
    return %c0_i32, %c0_i32_0 : i32, i32
  }
  func.func @transform_3(%arg0: i32, %arg1: i32) -> (i32, i32) {
    %c0_i32 = arith.constant 0 : i32
    %c0_i32_0 = arith.constant 0 : i32
    %c0_i32_1 = arith.constant 0 : i32
    return %c0_i32, %c0_i32_0 : i32, i32
  }
  func.func @transform_4(%arg0: i32, %arg1: i32) -> (i32, i32) {
    %c0_i32 = arith.constant 0 : i32
    %c0_i32_0 = arith.constant 0 : i32
    %c0_i32_1 = arith.constant 0 : i32
    return %c0_i32, %c0_i32_0 : i32, i32
  }
  func.func @transform_5(%arg0: i32, %arg1: i32) -> (i32, i32, i32) {
    %c0_i32 = arith.constant 0 : i32
    %c0_i32_0 = arith.constant 0 : i32
    return %c0_i32, %arg1, %arg0 : i32, i32, i32
  }
}

</mosaic_0001>

<llo_original>
// kernel: tpu_custom_call.1
$region0: #{tpu_custom_call.1}
  #allocation0 [shape = 'u32[]', space=smem, size = 0x4, offset = 0x4, fixed_abs, tag = 'smem constant byte address 0x4 - core index']
  #allocation1 [shape = 'u32[144,128]{1,0:T(1,128)}', space=vmem, size = 0x12000, scoped, tag = 'internal scratch']
  #allocation2 [shape = 'f32[2,128]{1,0:T(2,128)}', space=vmem, size = 0x400, scoped, tag = 'scratch operand']
  #allocation3 [shape = 'f32[1,128]{1,0:T(1,128)}', space=vmem, size = 0x200, scoped, tag = 'scratch operand']
  #allocation4 [shape = 'f32[1,1]{1,0:T(1,128)S(1)}', space=vmem, size = 0x200, scoped, tag = 'scoped memory for tpu_custom_call.1']
  %s0 = inlined_call_operand.vmem [shape: f32[2,128], index: 0, kind: input, shape index: {}]
  %s1 = inlined_call_operand.vmem [shape: f32[32,1], index: 1, kind: input, shape index: {}]
  %s2 = inlined_call_operand.vmem [shape: f32[32,1], index: 2, kind: input, shape index: {}]
  %s3 = inlined_call_operand.vmem [shape: f32[32,1], index: 3, kind: input, shape index: {}]
  %s4 = inlined_call_operand.<no memory space> [shape: f32[1,1], index: 4, kind: input, shape index: {}]
  %s5 = inlined_call_operand.hbm [shape: f32[2,8,128], index: 5, kind: output, shape index: {}]
  %s6 = sld [smem:[#allocation0]]
  $region34: #{tpu_custom_call.1} parent=0
    _
  %s8 = ssub.s32 1, %s6
  %s9 = scalar_select 0, %s8, %s6
  %v10 = vstv %s4
  %11 = vst [vmem:[#allocation4] sm:$0x1] %v10
  $region1: #{tpu_custom_call.1} parent=0
    #allocation5 [shape = 'u8[8192]{0}', space=vmem, size = 0x2000, scoped, tag = 'output window, operand 0, single buffered']
    #allocation6 [shape = 's32[1]{0}', space=sflag, size = 0x4, scoped, tag = 'scoped memory for tpu_custom_call.1']
    %12 = vsyncpa [#allocation6], 0
    // Predicated region
    $region2: #{tpu_custom_call.1} parent=1 // pred_check
      _
    $region3: #{tpu_custom_call.1} parent=1 // pred_check_branch
      %14 = sbr.rel (0) target = $region5
    $region4: #{tpu_custom_call.1} parent=1 // pred_region
      _
    $region5: #{tpu_custom_call.1} parent=1 // pred_fallthru
      _
    // Predicated region
    $region6: #{tpu_custom_call.1} parent=1 // pred_check
      _
    $region7: #{tpu_custom_call.1} parent=1 // pred_check_branch
      %16 = sbr.rel (0) target = $region9
    $region8: #{tpu_custom_call.1} parent=1 // pred_region
      _
    $region9: #{tpu_custom_call.1} parent=1 // pred_fallthru
      _
    // Predicated region
    $region10: #{tpu_custom_call.1} parent=1 // pred_check
      _
    $region11: #{tpu_custom_call.1} parent=1 // pred_check_branch
      %18 = sbr.rel (0) target = $region13
    $region12: #{tpu_custom_call.1} parent=1 // pred_region
      _
    $region13: #{tpu_custom_call.1} parent=1 // pred_fallthru
      _
    // Predicated region
    $region14: #{tpu_custom_call.1} parent=1 // pred_check
      _
    $region15: #{tpu_custom_call.1} parent=1 // pred_check_branch
      %20 = sbr.rel (0) target = $region17
    $region16: #{tpu_custom_call.1} parent=1 // pred_region
      _
    $region17: #{tpu_custom_call.1} parent=1 // pred_fallthru
      _
    // Predicated region
    $region18: #{tpu_custom_call.1} parent=1 // pred_check
      _
    $region19: #{tpu_custom_call.1} parent=1 // pred_check_branch
      %22 = sbr.rel (0) target = $region21
    $region20: #{tpu_custom_call.1} parent=1 // pred_region
      _
    $region21: #{tpu_custom_call.1} parent=1 // pred_fallthru
      _
    %v23 = vld [vmem:[%s1] sm:$0xff]
    %v24 = vld [vmem:[%s1 + $0x8] sm:$0xff]
    %v25 = vld [vmem:[%s1 + $0x10] sm:$0xff]
    %v26 = vld [vmem:[%s1 + $0x18] sm:$0xff]
    %28 = vset.pattern.permute.xlu0 0
    %29 = vperm.xlu0 %28, %v23
    %v30 = vpop.permute.xlu0 %29
    %33 = vset.pattern.permute.xlu0 0
    %34 = vperm.xlu0 %33, %v24
    %v35 = vpop.permute.xlu0 %34
    %38 = vset.pattern.permute.xlu0 0
    %39 = vperm.xlu0 %38, %v25
    %v40 = vpop.permute.xlu0 %39
    %43 = vset.pattern.permute.xlu0 0
    %44 = vperm.xlu0 %43, %v26
    %v45 = vpop.permute.xlu0 %44
    %v47 = vld [vmem:[%s2] sm:$0xff]
    %v48 = vld [vmem:[%s2 + $0x8] sm:$0xff]
    %v49 = vld [vmem:[%s2 + $0x10] sm:$0xff]
    %v50 = vld [vmem:[%s2 + $0x18] sm:$0xff]
    %52 = vset.pattern.permute.xlu0 0
    %53 = vperm.xlu0 %52, %v47
    %v54 = vpop.permute.xlu0 %53
    %57 = vset.pattern.permute.xlu0 0
    %58 = vperm.xlu0 %57, %v48
    %v59 = vpop.permute.xlu0 %58
    %62 = vset.pattern.permute.xlu0 0
    %63 = vperm.xlu0 %62, %v49
    %v64 = vpop.permute.xlu0 %63
    %67 = vset.pattern.permute.xlu0 0
    %68 = vperm.xlu0 %67, %v50
    %v69 = vpop.permute.xlu0 %68
    %v71 = vld [vmem:[%s3] sm:$0xff]
    %v72 = vld [vmem:[%s3 + $0x8] sm:$0xff]
    %v73 = vld [vmem:[%s3 + $0x10] sm:$0xff]
    %v74 = vld [vmem:[%s3 + $0x18] sm:$0xff]
    %76 = vset.pattern.permute.xlu0 0
    %77 = vperm.xlu0 %76, %v71
    %v78 = vpop.permute.xlu0 %77
    %81 = vset.pattern.permute.xlu0 0
    %82 = vperm.xlu0 %81, %v72
    %v83 = vpop.permute.xlu0 %82
    %86 = vset.pattern.permute.xlu0 0
    %87 = vperm.xlu0 %86, %v73
    %v88 = vpop.permute.xlu0 %87
    %91 = vset.pattern.permute.xlu0 0
    %92 = vperm.xlu0 %91, %v74
    %v93 = vpop.permute.xlu0 %92
    %v95 = vld [vmem:[#allocation4] sm:$0x1]
    %97 = vset.pattern.permute.xlu0 0
    %98 = vperm.xlu0 %97, %v95
    %v99 = vpop.permute.xlu0 %98
    %v101 = vlaneseq
    %v102 = vshrl.u32 %v101, 7
    %v103 = vsub.s32 0, %v102
    %v104 = vrot.slane %v99, %v103
    %p105 = scmp.eq.s32.totalorder 0, 0
    // Predicated region
    $region22: #{tpu_custom_call.1} parent=1 // pred_check
      %p106 = pneg %p105
    $region23: #{tpu_custom_call.1} parent=1 // pred_check_branch
      %108 = sbr.rel (%p106) target = $region25
    $region24: #{tpu_custom_call.1} parent=1 // pred_region
      %v109 = vld [vmem:[%s0] sm:$0x3]
      %110 = vst [vmem:[#allocation2] sm:$0x3] %v109
      %v111 = vld [vmem:[%s0] sm:$0x1]
      %v112 = vlaneseq
      %v113 = vshrl.u32 %v112, 7
      %v114 = vsub.s32 0, %v113
      %v115 = vrot.slane %v111, %v114
      %v116 = vmul.f32 %v30, %v115
      %v117 = vmul.f32 %v35, %v115
      %v118 = vmul.f32 %v40, %v115
      %v119 = vmul.f32 %v45, %v115
      %v120 = vadd.f32 %v116, %v54
      %v121 = vadd.f32 %v117, %v59
      %v122 = vadd.f32 %v118, %v64
      %v123 = vadd.f32 %v119, %v69
      %v124 = vtanh.pop %v120
      %v125 = vtanh.pop %v121
      %v126 = vtanh.pop %v122
      %v127 = vtanh.pop %v123
      %v128 = vmul.f32 %v124, %v78
      %v129 = vmul.f32 %v125, %v83
      %v130 = vmul.f32 %v126, %v88
      %v131 = vmul.f32 %v127, %v93
      %v132 = vadd.f32 %v128, %v129
      %v133 = vadd.f32 %v132, %v130
      %v134 = vadd.f32 %v133, %v131
      %v135 = vrot.slane %v134, 4
      %v136 = vadd.f32 %v134, %v135
      %v137 = vrot.slane %v136, 2
      %v138 = vadd.f32 %v136, %v137
      %v139 = vrot.slane %v138, 1
      %v140 = vadd.f32 %v138, %v139
      %v141 = vadd.f32 %v140, %v104
      %142 = vst [vmem:[#allocation3] sm:$0x1] %v141
    $region25: #{tpu_custom_call.1} parent=1 // pred_fallthru
      _
    %v143 = vld [vmem:[#allocation2] sm:$0x1]
    %v144 = vld [vmem:[#allocation2 + $0x1] sm:$0x1]
    %v145 = vld [vmem:[#allocation3] sm:$0x1]
    %v146 = vlaneseq
    %v147 = vshrl.u32 %v146, 7
    %v148 = vsub.s32 0, %v147
    %v149 = vrot.slane %v143, %v148
    %v150 = vmul.f32 %v30, %v149
    %v151 = vmul.f32 %v35, %v149
    %v152 = vmul.f32 %v40, %v149
    %v153 = vmul.f32 %v45, %v149
    %v154 = vadd.f32 %v150, %v54
    %v155 = vadd.f32 %v151, %v59
    %v156 = vadd.f32 %v152, %v64
    %v157 = vadd.f32 %v153, %v69
    %v158 = vtanh.pop %v154
    %v159 = vtanh.pop %v155
    %v160 = vtanh.pop %v156
    %v161 = vtanh.pop %v157
    %v162 = vmul.f32 %v158, %v78
    %v163 = vmul.f32 %v159, %v83
    %v164 = vmul.f32 %v160, %v88
    %v165 = vmul.f32 %v161, %v93
    %v166 = vadd.f32 %v162, %v163
    %v167 = vadd.f32 %v166, %v164
    %v168 = vadd.f32 %v167, %v165
    %v169 = vrot.slane %v168, 4
    %v170 = vadd.f32 %v168, %v169
    %v171 = vrot.slane %v170, 2
    %v172 = vadd.f32 %v170, %v171
    %v173 = vrot.slane %v172, 1
    %v174 = vadd.f32 %v172, %v173
    %v175 = vadd.f32 %v174, %v104
    %v176 = vmul.f32 %v144, 0.1
    %v177 = vadd.f32 %v143, %v176
    %v178 = vmul.f32 %v143, %v143
    %v179 = vsub.f32 1.0, %v178
    %v180 = vmul.f32 %v145, %v179
    %v181 = vmul.f32 %v180, %v144
    %v182 = vsub.f32 %v181, %v143
    %v183 = vmul.f32 %v182, 0.1
    %v184 = vadd.f32 %v144, %v183
    %v185 = vlaneseq
    %v186 = vshrl.u32 %v185, 7
    %v187 = vsub.s32 0, %v186
    %v188 = vrot.slane %v177, %v187
    %v189 = vmul.f32 %v30, %v188
    %v190 = vmul.f32 %v35, %v188
    %v191 = vmul.f32 %v40, %v188
    %v192 = vmul.f32 %v45, %v188
    %v193 = vadd.f32 %v189, %v54
    %v194 = vadd.f32 %v190, %v59
    %v195 = vadd.f32 %v191, %v64
    %v196 = vadd.f32 %v192, %v69
    %v197 = vtanh.pop %v193
    %v198 = vtanh.pop %v194
    %v199 = vtanh.pop %v195
    %v200 = vtanh.pop %v196
    %v201 = vmul.f32 %v197, %v78
    %v202 = vmul.f32 %v198, %v83
    %v203 = vmul.f32 %v199, %v88
    %v204 = vmul.f32 %v200, %v93
    %v205 = vadd.f32 %v201, %v202
    %v206 = vadd.f32 %v205, %v203
    %v207 = vadd.f32 %v206, %v204
    %v208 = vrot.slane %v207, 4
    %v209 = vadd.f32 %v207, %v208
    %v210 = vrot.slane %v209, 2
    %v211 = vadd.f32 %v209, %v210
    %v212 = vrot.slane %v211, 1
    %v213 = vadd.f32 %v211, %v212
    %v214 = vadd.f32 %v213, %v104
    %v215 = vmul.f32 %v184, 0.1
    %v216 = vadd.f32 %v177, %v215
    %v217 = vmul.f32 %v177, %v177
    %v218 = vsub.f32 1.0, %v217
    %v219 = vmul.f32 %v175, %v218
    %v220 = vmul.f32 %v219, %v184
    %v221 = vsub.f32 %v220, %v177
    %v222 = vmul.f32 %v221, 0.1
    %v223 = vadd.f32 %v184, %v222
    %v224 = vlaneseq
    %v225 = vshrl.u32 %v224, 7
    %v226 = vsub.s32 0, %v225
    %v227 = vrot.slane %v216, %v226
    %v228 = vmul.f32 %v30, %v227
    %v229 = vmul.f32 %v35, %v227
    %v230 = vmul.f32 %v40, %v227
    %v231 = vmul.f32 %v45, %v227
    %v232 = vadd.f32 %v228, %v54
    %v233 = vadd.f32 %v229, %v59
    %v234 = vadd.f32 %v230, %v64
    %v235 = vadd.f32 %v231, %v69
    %v236 = vtanh.pop %v232
    %v237 = vtanh.pop %v233
    %v238 = vtanh.pop %v234
    %v239 = vtanh.pop %v235
    %v240 = vmul.f32 %v236, %v78
    %v241 = vmul.f32 %v237, %v83
    %v242 = vmul.f32 %v238, %v88
    %v243 = vmul.f32 %v239, %v93
    %v244 = vadd.f32 %v240, %v241
    %v245 = vadd.f32 %v244, %v242
    %v246 = vadd.f32 %v245, %v243
    %v247 = vrot.slane %v246, 4
    %v248 = vadd.f32 %v246, %v247
    %v249 = vrot.slane %v248, 2
    %v250 = vadd.f32 %v248, %v249
    %v251 = vrot.slane %v250, 1
    %v252 = vadd.f32 %v250, %v251
    %v253 = vadd.f32 %v252, %v104
    %v254 = vmul.f32 %v223, 0.1
    %v255 = vadd.f32 %v216, %v254
    %v256 = vmul.f32 %v216, %v216
    %v257 = vsub.f32 1.0, %v256
    %v258 = vmul.f32 %v214, %v257
    %v259 = vmul.f32 %v258, %v223
    %v260 = vsub.f32 %v259, %v216
    %v261 = vmul.f32 %v260, 0.1
    %v262 = vadd.f32 %v223, %v261
    %v263 = vlaneseq
    %v264 = vshrl.u32 %v263, 7
    %v265 = vsub.s32 0, %v264
    %v266 = vrot.slane %v255, %v265
    %v267 = vmul.f32 %v30, %v266
    %v268 = vmul.f32 %v35, %v266
    %v269 = vmul.f32 %v40, %v266
    %v270 = vmul.f32 %v45, %v266
    %v271 = vadd.f32 %v267, %v54
    %v272 = vadd.f32 %v268, %v59
    %v273 = vadd.f32 %v269, %v64
    %v274 = vadd.f32 %v270, %v69
    %v275 = vtanh.pop %v271
    %v276 = vtanh.pop %v272
    %v277 = vtanh.pop %v273
    %v278 = vtanh.pop %v274
    %v279 = vmul.f32 %v275, %v78
    %v280 = vmul.f32 %v276, %v83
    %v281 = vmul.f32 %v277, %v88
    %v282 = vmul.f32 %v278, %v93
    %v283 = vadd.f32 %v279, %v280
    %v284 = vadd.f32 %v283, %v281
    %v285 = vadd.f32 %v284, %v282
    %v286 = vrot.slane %v285, 4
    %v287 = vadd.f32 %v285, %v286
    %v288 = vrot.slane %v287, 2
    %v289 = vadd.f32 %v287, %v288
    %v290 = vrot.slane %v289, 1
    %v291 = vadd.f32 %v289, %v290
    %v292 = vadd.f32 %v291, %v104
    %v293 = vmul.f32 %v262, 0.1
    %v294 = vadd.f32 %v255, %v293
    %v295 = vmul.f32 %v255, %v255
    %v296 = vsub.f32 1.0, %v295
    %v297 = vmul.f32 %v253, %v296
    %v298 = vmul.f32 %v297, %v262
    %v299 = vsub.f32 %v298, %v255
    %v300 = vmul.f32 %v299, 0.1
    %v301 = vadd.f32 %v262, %v300
    %v302 = vlaneseq
    %v303 = vshrl.u32 %v302, 7
    %v304 = vsub.s32 0, %v303
    %v305 = vrot.slane %v294, %v304
    %v306 = vmul.f32 %v30, %v305
    %v307 = vmul.f32 %v35, %v305
    %v308 = vmul.f32 %v40, %v305
    %v309 = vmul.f32 %v45, %v305
    %v310 = vadd.f32 %v306, %v54
    %v311 = vadd.f32 %v307, %v59
    %v312 = vadd.f32 %v308, %v64
    %v313 = vadd.f32 %v309, %v69
    %v314 = vtanh.pop %v310
    %v315 = vtanh.pop %v311
    %v316 = vtanh.pop %v312
    %v317 = vtanh.pop %v313
    %v318 = vmul.f32 %v314, %v78
    %v319 = vmul.f32 %v315, %v83
    %v320 = vmul.f32 %v316, %v88
    %v321 = vmul.f32 %v317, %v93
    %v322 = vadd.f32 %v318, %v319
    %v323 = vadd.f32 %v322, %v320
    %v324 = vadd.f32 %v323, %v321
    %v325 = vrot.slane %v324, 4
    %v326 = vadd.f32 %v324, %v325
    %v327 = vrot.slane %v326, 2
    %v328 = vadd.f32 %v326, %v327
    %v329 = vrot.slane %v328, 1
    %v330 = vadd.f32 %v328, %v329
    %v331 = vadd.f32 %v330, %v104
    %v332 = vmul.f32 %v301, 0.1
    %v333 = vadd.f32 %v294, %v332
    %v334 = vmul.f32 %v294, %v294
    %v335 = vsub.f32 1.0, %v334
    %v336 = vmul.f32 %v292, %v335
    %v337 = vmul.f32 %v336, %v301
    %v338 = vsub.f32 %v337, %v294
    %v339 = vmul.f32 %v338, 0.1
    %v340 = vadd.f32 %v301, %v339
    %v341 = vlaneseq
    %v342 = vshrl.u32 %v341, 7
    %v343 = vsub.s32 0, %v342
    %v344 = vrot.slane %v333, %v343
    %v345 = vmul.f32 %v30, %v344
    %v346 = vmul.f32 %v35, %v344
    %v347 = vmul.f32 %v40, %v344
    %v348 = vmul.f32 %v45, %v344
    %v349 = vadd.f32 %v345, %v54
    %v350 = vadd.f32 %v346, %v59
    %v351 = vadd.f32 %v347, %v64
    %v352 = vadd.f32 %v348, %v69
    %v353 = vtanh.pop %v349
    %v354 = vtanh.pop %v350
    %v355 = vtanh.pop %v351
    %v356 = vtanh.pop %v352
    %v357 = vmul.f32 %v353, %v78
    %v358 = vmul.f32 %v354, %v83
    %v359 = vmul.f32 %v355, %v88
    %v360 = vmul.f32 %v356, %v93
    %v361 = vadd.f32 %v357, %v358
    %v362 = vadd.f32 %v361, %v359
    %v363 = vadd.f32 %v362, %v360
    %v364 = vrot.slane %v363, 4
    %v365 = vadd.f32 %v363, %v364
    %v366 = vrot.slane %v365, 2
    %v367 = vadd.f32 %v365, %v366
    %v368 = vrot.slane %v367, 1
    %v369 = vadd.f32 %v367, %v368
    %v370 = vadd.f32 %v369, %v104
    %v371 = vmul.f32 %v340, 0.1
    %v372 = vadd.f32 %v333, %v371
    %v373 = vmul.f32 %v333, %v333
    %v374 = vsub.f32 1.0, %v373
    %v375 = vmul.f32 %v331, %v374
    %v376 = vmul.f32 %v375, %v340
    %v377 = vsub.f32 %v376, %v333
    %v378 = vmul.f32 %v377, 0.1
    %v379 = vadd.f32 %v340, %v378
    %v380 = vlaneseq
    %v381 = vshrl.u32 %v380, 7
    %v382 = vsub.s32 0, %v381
    %v383 = vrot.slane %v372, %v382
    %v384 = vmul.f32 %v30, %v383
    %v385 = vmul.f32 %v35, %v383
    %v386 = vmul.f32 %v40, %v383
    %v387 = vmul.f32 %v45, %v383
    %v388 = vadd.f32 %v384, %v54
    %v389 = vadd.f32 %v385, %v59
    %v390 = vadd.f32 %v386, %v64
    %v391 = vadd.f32 %v387, %v69
    %v392 = vtanh.pop %v388
    %v393 = vtanh.pop %v389
    %v394 = vtanh.pop %v390
    %v395 = vtanh.pop %v391
    %v396 = vmul.f32 %v392, %v78
    %v397 = vmul.f32 %v393, %v83
    %v398 = vmul.f32 %v394, %v88
    %v399 = vmul.f32 %v395, %v93
    %v400 = vadd.f32 %v396, %v397
    %v401 = vadd.f32 %v400, %v398
    %v402 = vadd.f32 %v401, %v399
    %v403 = vrot.slane %v402, 4
    %v404 = vadd.f32 %v402, %v403
    %v405 = vrot.slane %v404, 2
    %v406 = vadd.f32 %v404, %v405
    %v407 = vrot.slane %v406, 1
    %v408 = vadd.f32 %v406, %v407
    %v409 = vadd.f32 %v408, %v104
    %v410 = vmul.f32 %v379, 0.1
    %v411 = vadd.f32 %v372, %v410
    %v412 = vmul.f32 %v372, %v372
    %v413 = vsub.f32 1.0, %v412
    %v414 = vmul.f32 %v370, %v413
    %v415 = vmul.f32 %v414, %v379
    %v416 = vsub.f32 %v415, %v372
    %v417 = vmul.f32 %v416, 0.1
    %v418 = vadd.f32 %v379, %v417
    %v419 = vlaneseq
    %v420 = vshrl.u32 %v419, 7
    %v421 = vsub.s32 0, %v420
    %v422 = vrot.slane %v411, %v421
    %v423 = vmul.f32 %v30, %v422
    %v424 = vmul.f32 %v35, %v422
    %v425 = vmul.f32 %v40, %v422
    %v426 = vmul.f32 %v45, %v422
    %v427 = vadd.f32 %v423, %v54
    %v428 = vadd.f32 %v424, %v59
    %v429 = vadd.f32 %v425, %v64
    %v430 = vadd.f32 %v426, %v69
    %v431 = vtanh.pop %v427
    %v432 = vtanh.pop %v428
    %v433 = vtanh.pop %v429
    %v434 = vtanh.pop %v430
    %v435 = vmul.f32 %v431, %v78
    %v436 = vmul.f32 %v432, %v83
    %v437 = vmul.f32 %v433, %v88
    %v438 = vmul.f32 %v434, %v93
    %v439 = vadd.f32 %v435, %v436
    %v440 = vadd.f32 %v439, %v437
    %v441 = vadd.f32 %v440, %v438
    %v442 = vrot.slane %v441, 4
    %v443 = vadd.f32 %v441, %v442
    %v444 = vrot.slane %v443, 2
    %v445 = vadd.f32 %v443, %v444
    %v446 = vrot.slane %v445, 1
    %v447 = vadd.f32 %v445, %v446
    %v448 = vadd.f32 %v447, %v104
    %v449 = vmul.f32 %v418, 0.1
    %v450 = vadd.f32 %v411, %v449
    %v451 = vmul.f32 %v411, %v411
    %v452 = vsub.f32 1.0, %v451
    %v453 = vmul.f32 %v409, %v452
    %v454 = vmul.f32 %v453, %v418
    %v455 = vsub.f32 %v454, %v411
    %v456 = vmul.f32 %v455, 0.1
    %v457 = vadd.f32 %v418, %v456
    %v459 = vrot.slane %v177, 7
    %v462 = vrot.slane %v216, 6
    %v465 = vrot.slane %v255, 5
    %v468 = vrot.slane %v294, 4
    %v471 = vrot.slane %v333, 3
    %v474 = vrot.slane %v372, 2
    %v477 = vrot.slane %v411, 1
    %vm479 = vcmask 1040384
    %v480 = vsel %vm479, %v143, %v459
    %vm481 = vcmask 1041408
    %v482 = vsel %vm481, %v480, %v462
    %vm483 = vcmask 1042432
    %v484 = vsel %vm483, %v482, %v465
    %vm485 = vcmask 1043456
    %v486 = vsel %vm485, %v484, %v468
    %vm487 = vcmask 1044480
    %v488 = vsel %vm487, %v486, %v471
    %vm489 = vcmask 1045504
    %v490 = vsel %vm489, %v488, %v474
    %vm491 = vcmask 1046528
    %v492 = vsel %vm491, %v490, %v477
    %493 = vst [vmem:[#allocation5] sm:$0xff] %v492
    %v495 = vrot.slane %v184, 7
    %v498 = vrot.slane %v223, 6
    %v501 = vrot.slane %v262, 5
    %v504 = vrot.slane %v301, 4
    %v507 = vrot.slane %v340, 3
    %v510 = vrot.slane %v379, 2
    %v513 = vrot.slane %v418, 1
    %v515 = vsel %vm479, %v144, %v495
    %v516 = vsel %vm481, %v515, %v498
    %v517 = vsel %vm483, %v516, %v501
    %v518 = vsel %vm485, %v517, %v504
    %v519 = vsel %vm487, %v518, %v507
    %v520 = vsel %vm489, %v519, %v510
    %v521 = vsel %vm491, %v520, %v513
    %s522 = sadd.s32 0, 8
    %s523 = scalar_lea.vmem [#allocation5], %s522
    %524 = vst [vmem:[%s523] sm:$0xff] %v521
    %525 = vst [vmem:[#allocation2] sm:$0x1] %v450
    %526 = vst [vmem:[#allocation2 + $0x1] sm:$0x1] %v457
    %527 = vst [vmem:[#allocation3] sm:$0x1] %v448
    // Predicated region
    $region26: #{tpu_custom_call.1} parent=1 // pred_check
      _
    $region27: #{tpu_custom_call.1} parent=1 // pred_check_branch
      %529 = sbr.rel (0) target = $region29
    $region28: #{tpu_custom_call.1} parent=1 // pred_region
      %s531 = ssub.s32 256, 256
      %532 = vsyncadd [#allocation6], %s531
      %s533 = sshll.u32 [#allocation5], 4
      %s534 = int_to_ptr.vmem [resolvable:$true] %s533
      %539 = dma.vmem_to_hbm [thread:$0]  %s534, 256, %s5, [#allocation6], 128, 128, 8
    $region29: #{tpu_custom_call.1} parent=1 // pred_fallthru
      _
    // Predicated region
    $region30: #{tpu_custom_call.1} parent=1 // pred_check
      _
    $region31: #{tpu_custom_call.1} parent=1 // pred_check_branch
      %541 = sbr.rel (0) target = $region33
    $region32: #{tpu_custom_call.1} parent=1 // pred_region
      %542 = dma.done [#allocation6], 256
    $region33: #{tpu_custom_call.1} parent=1 // pred_fallthru
      _
    %543 = vsyncpa [#allocation6], 1

</llo_original>
